<compile_context>
chip_gen: v5e
topology: v5e:2x2
jax: 0.10.0
libtpu: 0.0.40
codegen_flags: <defaults>
</compile_context>

<pallas_src>
import functools

import jax
import jax.numpy as jnp
from jax.experimental import pallas as pl
from jax.experimental.pallas import tpu as pltpu

EPS = 1e-5
LANES = 128
NEG_FILL = -1e30   # 0.5*(tanh(0.5*NEG_FILL)+1) == 0.0 exactly -> neutral pad


def _round_up(x, m):
    return ((x + m - 1) // m) * m


def _dice_partial_kernel(p_ref, t_ref, out_ref, *, m_rows, need_mask, acc_rows):
    """Grid = (splits, steps).  Streams tiles and accumulates partials.

    p_ref / t_ref : (block_rows, 128) tiles of the flattened inputs.
    out_ref       : (1, 2, acc_rows, 128) f32 block, resident across the
                    reduction axis (axis 1); [0,0]=intersection, [0,1]=union.
    """
    @pl.when(pl.program_id(1) == 0)
    def _init():
        out_ref[...] = jnp.zeros_like(out_ref)

    x = p_ref[...].astype(jnp.float32)
    t = t_ref[...].astype(jnp.float32)

    # sigmoid(x) = 0.5 * (tanh(0.5*x) + 1): a single EUP push + cheap VPU ops.
    pre = 0.5 * (jnp.tanh(0.5 * x) + 1.0)

    if need_mask:
        # Rows past the true row count hold unspecified data (the grid /
        # last block overshoots the array); zero their contribution.
        # Row indices fit comfortably in int32 (rows = elements / 128).
        br = p_ref.shape[0]
        blk = pl.program_id(0) * pl.num_programs(1) + pl.program_id(1)
        row = blk * br + jax.lax.broadcasted_iota(jnp.int32, p_ref.shape, 0)
        valid = row < m_rows
        pre = jnp.where(valid, pre, 0.0)
        t = jnp.where(valid, t, 0.0)

    # Two-stage reduction: (br,128) -> (acc_rows,128) partial.  The acc_rows
    # x 128 outputs form several independent vreg add chains (uses all 4 VALU
    # slots) instead of one long serial chain down to (8,128).
    inter = (pre * t).reshape(-1, acc_rows, LANES).sum(axis=0)
    union = (pre + t).reshape(-1, acc_rows, LANES).sum(axis=0)
    out_ref[0, 0] += inter
    out_ref[0, 1] += union


def dice_loss(predict, target, *, block_rows=None, num_splits=None):
    """Dice loss matching PyTorch DiceLoss.forward semantics (f32 accumulate)."""
    assert predict.shape == target.shape, (
        "the size of predict and target must be equal.")

    kind = ""
    try:
        kind = jax.devices()[0].device_kind.lower()
    except Exception:
        pass
    is_v7 = "v7" in kind

    total = int(predict.size)
    p_flat = predict.reshape(-1)
    t_flat = target.reshape(-1)

    m_rows = (total + LANES - 1) // LANES     # rows of 128 lanes needed

    # --- tile / grid geometry ------------------------------------------------
    # v7x: 64 MiB VMEM, 2 TCs -> 2 MiB f32 tiles, split across cores.
    # v5e/v6e: 128 MiB VMEM, 1 TC -> 4 MiB f32 tiles, single split.
    if block_rows is None:
        block_rows = 4096 if is_v7 else 8192
    block_rows_eff = max(32, (int(block_rows) // 32) * 32)

    if m_rows > block_rows_eff:
        # Streaming path: many blocks; the last (partial) block is masked
        # in-kernel.  No row padding -> no extra HBM pass.
        br = block_rows_eff
        rows_alloc = m_rows           # physical rows in the (M,128) view
        acc_rows = 32
    else:
        # Single-block path: make the block exactly match the (tiny, possibly
        # 8-row-padded) array, so no masking and no oversized block.
        rows_alloc = _round_up(max(m_rows, 8), 8)
        br = rows_alloc
        acc_rows = 32 if br % 32 == 0 else (16 if br % 16 == 0 else 8)

    # --- lane-dense (M, 128) view; pad ONLY to the next 128/row boundary -----
    # Neutral fill: sigmoid(NEG_FILL) == 0 (tanh form is exact), target 0, so
    # padded elements contribute nothing to either sum.  When total is already
    # a multiple of 128 (and rows_alloc == m_rows) this is a zero-copy reshape.
    padded_total = rows_alloc * LANES
    if padded_total != total:
        p_flat = jnp.pad(p_flat, (0, padded_total - total),
                         constant_values=NEG_FILL)
        t_flat = jnp.pad(t_flat, (0, padded_total - total), constant_values=0)
    p2 = p_flat.reshape(rows_alloc, LANES)
    t2 = t_flat.reshape(rows_alloc, LANES)

    itemsize = max(jnp.dtype(p2.dtype).itemsize, jnp.dtype(t2.dtype).itemsize)
    total_blocks = (rows_alloc + br - 1) // br

    if num_splits is None:
        num_splits = 2 if (is_v7 and total_blocks >= 2) else 1
    num_splits = max(1, min(int(num_splits), total_blocks))

    def _run(splits, core_parallel, n_buf):
        steps = (total_blocks + splits - 1) // splits
        need_mask = splits * steps * br > m_rows
        buffers = n_buf if steps >= n_buf else 2

        def idx_map(c, i):
            # Clamp so a (rare) fully out-of-range trailing block re-reads the
            # last valid block; its contribution is masked to zero in-kernel.
            return (jnp.minimum(c * steps + i, total_blocks - 1), 0)

        spec_kwargs = {}
        if buffers != 2:
            spec_kwargs["pipeline_mode"] = pl.Buffered(buffers)
        in_spec = pl.BlockSpec((br, LANES), idx_map, **spec_kwargs)

        if core_parallel:
            dim_sems = (pltpu.CORE_PARALLEL, pltpu.ARBITRARY)
        else:
            dim_sems = ("arbitrary", "arbitrary")

        tile_bytes = br * LANES * itemsize
        vmem_limit = 2 * buffers * tile_bytes + (8 << 20)
        vmem_limit = max(32 << 20, min(vmem_limit, 48 << 20))

        kernel = functools.partial(
            _dice_partial_kernel, m_rows=m_rows, need_mask=need_mask,
            acc_rows=acc_rows)

        return pl.pallas_call(
            kernel,
            out_shape=jax.ShapeDtypeStruct((splits, 2, acc_rows, LANES),
                                           jnp.float32),
            grid_spec=pltpu.PrefetchScalarGridSpec(
                num_scalar_prefetch=0,
                grid=(splits, steps),
                in_specs=[in_spec, in_spec],
                out_specs=pl.BlockSpec((1, 2, acc_rows, LANES),
                                       lambda c, i: (c, 0, 0, 0)),
            ),
            compiler_params=pltpu.CompilerParams(
                dimension_semantics=dim_sems,
                vmem_limit_bytes=vmem_limit,
            ),
        )(p2, t2)

    try:
        partials = _run(num_splits,
                        core_parallel=(is_v7 and num_splits > 1),
                        n_buf=3)
    except Exception:
        # Conservative known-good configuration (single split, default
        # double-buffering, plain "arbitrary" semantics).
        partials = _run(1, core_parallel=False, n_buf=2)

    # Tiny epilogue: combine vreg-shaped partials to scalars.
    inter = jnp.sum(partials[:, 0])
    union = jnp.sum(partials[:, 1])
    return 1.0 - 2.0 * (inter + EPS) / (union + EPS)


def _dice_loss_ref(predict, target):
    n = predict.shape[0]
    pre = jax.nn.sigmoid(predict.astype(jnp.float32)).reshape(n, -1)
    tar = target.astype(jnp.float32).reshape(n, -1)
    intersection = jnp.sum(jnp.sum(pre * tar, axis=-1))
    union = jnp.sum(jnp.sum(pre + tar, axis=-1))
    return 1.0 - 2.0 * (intersection + EPS) / (union + EPS)


if __name__ == "__main__":
    key = jax.random.PRNGKey(0)
    k1, k2, k3, k4, k5, k6 = jax.random.split(key, 6)

    # 1) NCHW logits vs. binary mask (element count multiple of 128:
    #    zero-copy path, no pad, no mask).
    predict = jax.random.normal(k1, (2, 4, 16, 16), dtype=jnp.float32)
    target = (jax.random.uniform(k2, (2, 4, 16, 16)) > 0.5).astype(jnp.float32)
    score = dice_loss(predict, target)
    jax.block_until_ready(score)
    ref = _dice_loss_ref(predict, target)
    assert jnp.allclose(score, ref, atol=1e-5, rtol=1e-5), (score, ref)

    # 2) Ragged element count (not a multiple of 128): exercises the small
    #    neutral-pad fallback.
    predict2 = jax.random.normal(k3, (3, 5, 7, 11), dtype=jnp.float32)
    target2 = (jax.random.uniform(k4, (3, 5, 7, 11)) > 0.5).astype(jnp.float32)
    score2 = dice_loss(predict2, target2)
    jax.block_until_ready(score2)
    ref2 = _dice_loss_ref(predict2, target2)
    assert jnp.allclose(score2, ref2, atol=1e-5, rtol=1e-5), (score2, ref2)

    # 3) Force the multi-block streaming path with a partial last block
    #    (exercises the in-kernel row mask) by using a small block_rows.
    predict3 = jax.random.normal(k5, (2, 4, 20, 32), dtype=jnp.float32)
    target3 = (jax.random.uniform(k6, (2, 4, 20, 32)) > 0.5).astype(jnp.float32)
    score3 = dice_loss(predict3, target3, block_rows=32)
    jax.block_until_ready(score3)
    ref3 = _dice_loss_ref(predict3, target3)
    assert jnp.allclose(score3, ref3, atol=1e-5, rtol=1e-5), (score3, ref3)

    print("KERNEL_OK")
</pallas_src>

<mosaic_0001>
module attributes {stable_mosaic.version = 11 : i64} {
  func.func @_dice_partial_kernel(%arg0: i32, %arg1: i32, %arg2: memref<16x128xf32, #tpu.memory_space<vmem>>, %arg3: memref<16x128xf32, #tpu.memory_space<vmem>>, %arg4: memref<1x2x16x128xf32, #tpu.memory_space<vmem>>) attributes {dimension_semantics = [#tpu.dimension_semantics<arbitrary>, #tpu.dimension_semantics<arbitrary>], iteration_bounds = array<i64: 1, 1>, scalar_prefetch = 0 : i64, scratch_operands = 0 : i64, tpu.core_type = #tpu.core_type<tc>, window_params = [{transform_indices = @transform_0, window_bounds = array<i64: 16, 128>}, {transform_indices = @transform_1, window_bounds = array<i64: 16, 128>}, {transform_indices = @transform_2, window_bounds = array<i64: 1, 2, 16, 128>}]} {
    %c0_i32 = arith.constant 0 : i32
    %0 = arith.cmpi eq, %arg1, %c0_i32 : i32
    %1 = arith.extui %0 : i1 to i32
    %c0_i32_0 = arith.constant 0 : i32
    %2 = arith.cmpi ne, %1, %c0_i32_0 : i32
    scf.if %2 {
      %cst_23 = arith.constant 0.000000e+00 : f32
      %30 = vector.broadcast %cst_23 : f32 to vector<1x2x16x128xf32>
      %c0_24 = arith.constant 0 : index
      %c0_25 = arith.constant 0 : index
      %c0_26 = arith.constant 0 : index
      %c0_27 = arith.constant 0 : index
      %31 = vector.load %arg4[%c0_24, %c0_25, %c0_26, %c0_27] : memref<1x2x16x128xf32, #tpu.memory_space<vmem>>, vector<1x2x16x128xf32>
      tpu.vector_store %arg4[%c0_24, %c0_25, %c0_26, %c0_27], %30 {strides = array<i32>} : memref<1x2x16x128xf32, #tpu.memory_space<vmem>>, vector<1x2x16x128xf32>,
    } else {
    }
    %c0 = arith.constant 0 : index
    %c0_1 = arith.constant 0 : index
    %3 = vector.load %arg2[%c0, %c0_1] : memref<16x128xf32, #tpu.memory_space<vmem>>, vector<16x128xf32>
    %c0_2 = arith.constant 0 : index
    %c0_3 = arith.constant 0 : index
    %4 = vector.load %arg3[%c0_2, %c0_3] : memref<16x128xf32, #tpu.memory_space<vmem>>, vector<16x128xf32>
    %cst = arith.constant 5.000000e-01 : f32
    %5 = vector.broadcast %cst : f32 to vector<16x128xf32>
    %6 = arith.mulf %5, %3 : vector<16x128xf32>
    %7 = math.tanh %6 : vector<16x128xf32>
    %cst_4 = arith.constant 1.000000e+00 : f32
    %8 = vector.broadcast %cst_4 : f32 to vector<16x128xf32>
    %9 = arith.addf %7, %8 : vector<16x128xf32>
    %cst_5 = arith.constant 5.000000e-01 : f32
    %10 = vector.broadcast %cst_5 : f32 to vector<16x128xf32>
    %11 = arith.mulf %10, %9 : vector<16x128xf32>
    %12 = arith.mulf %11, %4 : vector<16x128xf32>
    %13 = vector.shape_cast %12 : vector<16x128xf32> to vector<1x16x128xf32>
    %cst_6 = arith.constant dense<0.000000e+00> : vector<16x128xf32>
    %14 = vector.multi_reduction <add>, %13, %cst_6 [0] : vector<1x16x128xf32> to vector<16x128xf32>
    %15 = arith.addf %11, %4 : vector<16x128xf32>
    %16 = vector.shape_cast %15 : vector<16x128xf32> to vector<1x16x128xf32>
    %cst_7 = arith.constant dense<0.000000e+00> : vector<16x128xf32>
    %17 = vector.multi_reduction <add>, %16, %cst_7 [0] : vector<1x16x128xf32> to vector<16x128xf32>
    %c0_8 = arith.constant 0 : index
    %c0_9 = arith.constant 0 : index
    %c0_10 = arith.constant 0 : index
    %c0_11 = arith.constant 0 : index
    %18 = vector.load %arg4[%c0_8, %c0_9, %c0_10, %c0_11] : memref<1x2x16x128xf32, #tpu.memory_space<vmem>>, vector<1x1x16x128xf32>
    %19 = vector.shape_cast %18 : vector<1x1x16x128xf32> to vector<16x128xf32>
    %20 = arith.addf %19, %14 : vector<16x128xf32>
    %c0_12 = arith.constant 0 : index
    %c0_13 = arith.constant 0 : index
    %c0_14 = arith.constant 0 : index
    %c0_15 = arith.constant 0 : index
    %21 = vector.load %arg4[%c0_12, %c0_13, %c0_14, %c0_15] : memref<1x2x16x128xf32, #tpu.memory_space<vmem>>, vector<1x1x16x128xf32>
    %22 = vector.shape_cast %21 : vector<1x1x16x128xf32> to vector<16x128xf32>
    %23 = vector.shape_cast %20 : vector<16x128xf32> to vector<1x1x16x128xf32>
    tpu.vector_store %arg4[%c0_12, %c0_13, %c0_14, %c0_15], %23 {strides = array<i32>} : memref<1x2x16x128xf32, #tpu.memory_space<vmem>>, vector<1x1x16x128xf32>,
    %c0_16 = arith.constant 0 : index
    %c1 = arith.constant 1 : index
    %c0_17 = arith.constant 0 : index
    %c0_18 = arith.constant 0 : index
    %24 = vector.load %arg4[%c0_16, %c1, %c0_17, %c0_18] : memref<1x2x16x128xf32, #tpu.memory_space<vmem>>, vector<1x1x16x128xf32>
    %25 = vector.shape_cast %24 : vector<1x1x16x128xf32> to vector<16x128xf32>
    %26 = arith.addf %25, %17 : vector<16x128xf32>
    %c0_19 = arith.constant 0 : index
    %c1_20 = arith.constant 1 : index
    %c0_21 = arith.constant 0 : index
    %c0_22 = arith.constant 0 : index
    %27 = vector.load %arg4[%c0_19, %c1_20, %c0_21, %c0_22] : memref<1x2x16x128xf32, #tpu.memory_space<vmem>>, vector<1x1x16x128xf32>
    %28 = vector.shape_cast %27 : vector<1x1x16x128xf32> to vector<16x128xf32>
    %29 = vector.shape_cast %26 : vector<16x128xf32> to vector<1x1x16x128xf32>
    tpu.vector_store %arg4[%c0_19, %c1_20, %c0_21, %c0_22], %29 {strides = array<i32>} : memref<1x2x16x128xf32, #tpu.memory_space<vmem>>, vector<1x1x16x128xf32>,
    return
  }
  func.func @transform_0(%arg0: i32, %arg1: i32) -> (i32, i32) {
    %c1_i32 = arith.constant 1 : i32
    %0 = arith.muli %arg0, %c1_i32 : i32
    %1 = arith.addi %0, %arg1 : i32
    %c0_i32 = arith.constant 0 : i32
    %2 = arith.minsi %1, %c0_i32 : i32
    %c0_i32_0 = arith.constant 0 : i32
    %c0_i32_1 = arith.constant 0 : i32
    return %2, %c0_i32_0 : i32, i32
  }
  func.func @transform_1(%arg0: i32, %arg1: i32) -> (i32, i32) {
    %c1_i32 = arith.constant 1 : i32
    %0 = arith.muli %arg0, %c1_i32 : i32
    %1 = arith.addi %0, %arg1 : i32
    %c0_i32 = arith.constant 0 : i32
    %2 = arith.minsi %1, %c0_i32 : i32
    %c0_i32_0 = arith.constant 0 : i32
    %c0_i32_1 = arith.constant 0 : i32
    return %2, %c0_i32_0 : i32, i32
  }
  func.func @transform_2(%arg0: i32, %arg1: i32) -> (i32, i32, i32, i32) {
    %c0_i32 = arith.constant 0 : i32
    %c0_i32_0 = arith.constant 0 : i32
    %c0_i32_1 = arith.constant 0 : i32
    %c0_i32_2 = arith.constant 0 : i32
    return %arg0, %c0_i32, %c0_i32_0, %c0_i32_1 : i32, i32, i32, i32
  }
}

module attributes {stable_mosaic.version = 11 : i64} {
  func.func @_dice_partial_kernel(%arg0: i32, %arg1: i32, %arg2: memref<16x128xf32, #tpu.memory_space<vmem>>, %arg3: memref<16x128xf32, #tpu.memory_space<vmem>>, %arg4: memref<1x2x16x128xf32, #tpu.memory_space<vmem>>) attributes {dimension_semantics = [#tpu.dimension_semantics<arbitrary>, #tpu.dimension_semantics<arbitrary>], iteration_bounds = array<i64: 1, 1>, scalar_prefetch = 0 : i64, scratch_operands = 0 : i64, tpu.core_type = #tpu.core_type<tc>, window_params = [{transform_indices = @transform_0, window_bounds = array<i64: 16, 128>}, {transform_indices = @transform_1, window_bounds = array<i64: 16, 128>}, {transform_indices = @transform_2, window_bounds = array<i64: 1, 2, 16, 128>}]} {
    %c0_i32 = arith.constant 0 : i32
    %0 = arith.cmpi eq, %arg1, %c0_i32 : i32
    %1 = arith.extui %0 : i1 to i32
    %c0_i32_0 = arith.constant 0 : i32
    %2 = arith.cmpi ne, %1, %c0_i32_0 : i32
    scf.if %2 {
      %cst_23 = arith.constant 0.000000e+00 : f32
      %30 = vector.broadcast %cst_23 : f32 to vector<1x2x16x128xf32>
      %c0_24 = arith.constant 0 : index
      %c0_25 = arith.constant 0 : index
      %c0_26 = arith.constant 0 : index
      %c0_27 = arith.constant 0 : index
      %31 = vector.load %arg4[%c0_24, %c0_25, %c0_26, %c0_27] : memref<1x2x16x128xf32, #tpu.memory_space<vmem>>, vector<1x2x16x128xf32>
      tpu.vector_store %arg4[%c0_24, %c0_25, %c0_26, %c0_27], %30 {strides = array<i32>} : memref<1x2x16x128xf32, #tpu.memory_space<vmem>>, vector<1x2x16x128xf32>,
    } else {
    }
    %c0 = arith.constant 0 : index
    %c0_1 = arith.constant 0 : index
    %3 = vector.load %arg2[%c0, %c0_1] : memref<16x128xf32, #tpu.memory_space<vmem>>, vector<16x128xf32>
    %c0_2 = arith.constant 0 : index
    %c0_3 = arith.constant 0 : index
    %4 = vector.load %arg3[%c0_2, %c0_3] : memref<16x128xf32, #tpu.memory_space<vmem>>, vector<16x128xf32>
    %cst = arith.constant 5.000000e-01 : f32
    %5 = vector.broadcast %cst : f32 to vector<16x128xf32>
    %6 = arith.mulf %5, %3 : vector<16x128xf32>
    %7 = math.tanh %6 : vector<16x128xf32>
    %cst_4 = arith.constant 1.000000e+00 : f32
    %8 = vector.broadcast %cst_4 : f32 to vector<16x128xf32>
    %9 = arith.addf %7, %8 : vector<16x128xf32>
    %cst_5 = arith.constant 5.000000e-01 : f32
    %10 = vector.broadcast %cst_5 : f32 to vector<16x128xf32>
    %11 = arith.mulf %10, %9 : vector<16x128xf32>
    %12 = arith.mulf %11, %4 : vector<16x128xf32>
    %13 = vector.shape_cast %12 : vector<16x128xf32> to vector<1x16x128xf32>
    %cst_6 = arith.constant dense<0.000000e+00> : vector<16x128xf32>
    %14 = vector.multi_reduction <add>, %13, %cst_6 [0] : vector<1x16x128xf32> to vector<16x128xf32>
    %15 = arith.addf %11, %4 : vector<16x128xf32>
    %16 = vector.shape_cast %15 : vector<16x128xf32> to vector<1x16x128xf32>
    %cst_7 = arith.constant dense<0.000000e+00> : vector<16x128xf32>
    %17 = vector.multi_reduction <add>, %16, %cst_7 [0] : vector<1x16x128xf32> to vector<16x128xf32>
    %c0_8 = arith.constant 0 : index
    %c0_9 = arith.constant 0 : index
    %c0_10 = arith.constant 0 : index
    %c0_11 = arith.constant 0 : index
    %18 = vector.load %arg4[%c0_8, %c0_9, %c0_10, %c0_11] : memref<1x2x16x128xf32, #tpu.memory_space<vmem>>, vector<1x1x16x128xf32>
    %19 = vector.shape_cast %18 : vector<1x1x16x128xf32> to vector<16x128xf32>
    %20 = arith.addf %19, %14 : vector<16x128xf32>
    %c0_12 = arith.constant 0 : index
    %c0_13 = arith.constant 0 : index
    %c0_14 = arith.constant 0 : index
    %c0_15 = arith.constant 0 : index
    %21 = vector.load %arg4[%c0_12, %c0_13, %c0_14, %c0_15] : memref<1x2x16x128xf32, #tpu.memory_space<vmem>>, vector<1x1x16x128xf32>
    %22 = vector.shape_cast %21 : vector<1x1x16x128xf32> to vector<16x128xf32>
    %23 = vector.shape_cast %20 : vector<16x128xf32> to vector<1x1x16x128xf32>
    tpu.vector_store %arg4[%c0_12, %c0_13, %c0_14, %c0_15], %23 {strides = array<i32>} : memref<1x2x16x128xf32, #tpu.memory_space<vmem>>, vector<1x1x16x128xf32>,
    %c0_16 = arith.constant 0 : index
    %c1 = arith.constant 1 : index
    %c0_17 = arith.constant 0 : index
    %c0_18 = arith.constant 0 : index
    %24 = vector.load %arg4[%c0_16, %c1, %c0_17, %c0_18] : memref<1x2x16x128xf32, #tpu.memory_space<vmem>>, vector<1x1x16x128xf32>
    %25 = vector.shape_cast %24 : vector<1x1x16x128xf32> to vector<16x128xf32>
    %26 = arith.addf %25, %17 : vector<16x128xf32>
    %c0_19 = arith.constant 0 : index
    %c1_20 = arith.constant 1 : index
    %c0_21 = arith.constant 0 : index
    %c0_22 = arith.constant 0 : index
    %27 = vector.load %arg4[%c0_19, %c1_20, %c0_21, %c0_22] : memref<1x2x16x128xf32, #tpu.memory_space<vmem>>, vector<1x1x16x128xf32>
    %28 = vector.shape_cast %27 : vector<1x1x16x128xf32> to vector<16x128xf32>
    %29 = vector.shape_cast %26 : vector<16x128xf32> to vector<1x1x16x128xf32>
    tpu.vector_store %arg4[%c0_19, %c1_20, %c0_21, %c0_22], %29 {strides = array<i32>} : memref<1x2x16x128xf32, #tpu.memory_space<vmem>>, vector<1x1x16x128xf32>,
    return
  }
  func.func @transform_0(%arg0: i32, %arg1: i32) -> (i32, i32) {
    %c1_i32 = arith.constant 1 : i32
    %0 = arith.muli %arg0, %c1_i32 : i32
    %1 = arith.addi %0, %arg1 : i32
    %c0_i32 = arith.constant 0 : i32
    %2 = arith.minsi %1, %c0_i32 : i32
    %c0_i32_0 = arith.constant 0 : i32
    %c0_i32_1 = arith.constant 0 : i32
    return %2, %c0_i32_0 : i32, i32
  }
  func.func @transform_1(%arg0: i32, %arg1: i32) -> (i32, i32) {
    %c1_i32 = arith.constant 1 : i32
    %0 = arith.muli %arg0, %c1_i32 : i32
    %1 = arith.addi %0, %arg1 : i32
    %c0_i32 = arith.constant 0 : i32
    %2 = arith.minsi %1, %c0_i32 : i32
    %c0_i32_0 = arith.constant 0 : i32
    %c0_i32_1 = arith.constant 0 : i32
    return %2, %c0_i32_0 : i32, i32
  }
  func.func @transform_2(%arg0: i32, %arg1: i32) -> (i32, i32, i32, i32) {
    %c0_i32 = arith.constant 0 : i32
    %c0_i32_0 = arith.constant 0 : i32
    %c0_i32_1 = arith.constant 0 : i32
    %c0_i32_2 = arith.constant 0 : i32
    return %arg0, %c0_i32, %c0_i32_0, %c0_i32_1 : i32, i32, i32, i32
  }
}

</mosaic_0001>

<llo_original>
// kernel: tpu_custom_call.1
$region0: #{tpu_custom_call.1}
  #allocation0 [shape = 'u32[]', space=smem, size = 0x4, offset = 0x4, fixed_abs, tag = 'smem constant byte address 0x4 - core index']
  #allocation1 [shape = 'u32[72,128]{1,0:T(1,128)}', space=vmem, size = 0x9000, scoped, tag = 'internal scratch']
  %s0 = inlined_call_operand.hbm [shape: f32[16,128], index: 0, kind: input, shape index: {}]
  %s1 = inlined_call_operand.hbm [shape: f32[16,128], index: 1, kind: input, shape index: {}]
  %s2 = inlined_call_operand.hbm [shape: f32[1,2,16,128], index: 2, kind: output, shape index: {}]
  %s3 = sld [smem:[#allocation0]]
  $region30: #{tpu_custom_call.1} parent=0
    _
  %s5 = ssub.s32 1, %s3
  %s6 = scalar_select 0, %s5, %s3
  $region1: #{tpu_custom_call.1} parent=0
    #allocation2 [shape = 'u8[8192]{0}', space=vmem, size = 0x2000, scoped, tag = 'input window, operand 0, single buffered']
    #allocation3 [shape = 's32[1]{0}', space=sflag, size = 0x4, scoped, tag = 'scoped memory for tpu_custom_call.1']
    #allocation4 [shape = 's32[1]{0}', space=sflag, size = 0x4, scoped, tag = 'scoped memory for tpu_custom_call.1']
    #allocation5 [shape = 'u8[8192]{0}', space=vmem, size = 0x2000, scoped, tag = 'input window, operand 1, single buffered']
    #allocation6 [shape = 's32[1]{0}', space=sflag, size = 0x4, scoped, tag = 'scoped memory for tpu_custom_call.1']
    #allocation7 [shape = 'u8[16384]{0}', space=vmem, size = 0x4000, scoped, tag = 'output window, operand 0, single buffered']
    %7 = vsyncpa [#allocation3], 0
    %8 = vsyncpa [#allocation6], 0
    %9 = vsyncpa [#allocation4], 0
    // Predicated region
    $region2: #{tpu_custom_call.1} parent=1 // pred_check
      _
    $region3: #{tpu_custom_call.1} parent=1 // pred_check_branch
      %11 = sbr.rel (0) target = $region5
    $region4: #{tpu_custom_call.1} parent=1 // pred_region
      %s12 = sadd.s32 0, 0
      %p13 = scmp.lt.s32.totalorder %s12, 0
      %s14 = scalar_select %p13, %s12, 0
      %s15 = smul.u32 2, %s14
      %17 = vsyncadd [#allocation3], 0
      %s18 = smul.addr %s15, 8
      %s19 = scalar_lea.hbm %s0, %s18
      %s20 = sshll.u32 %s19, 4
      %s21 = int_to_ptr.hbm [resolvable:$true] %s20
      %s22 = sshll.u32 [#allocation2], 4
      %s23 = int_to_ptr.vmem [resolvable:$true] %s22
      %28 = dma.hbm_to_vmem [thread:$0]  %s21, 256, %s23, [#allocation3], 128, 128, 8
    $region5: #{tpu_custom_call.1} parent=1 // pred_fallthru
      _
    // Predicated region
    $region6: #{tpu_custom_call.1} parent=1 // pred_check
      _
    $region7: #{tpu_custom_call.1} parent=1 // pred_check_branch
      %30 = sbr.rel (0) target = $region9
    $region8: #{tpu_custom_call.1} parent=1 // pred_region
      %s31 = sadd.s32 0, 0
      %p32 = scmp.lt.s32.totalorder %s31, 0
      %s33 = scalar_select %p32, %s31, 0
      %s34 = smul.u32 2, %s33
      %36 = vsyncadd [#allocation6], 0
      %s37 = smul.addr %s34, 8
      %s38 = scalar_lea.hbm %s1, %s37
      %s39 = sshll.u32 %s38, 4
      %s40 = int_to_ptr.hbm [resolvable:$true] %s39
      %s41 = sshll.u32 [#allocation5], 4
      %s42 = int_to_ptr.vmem [resolvable:$true] %s41
      %47 = dma.hbm_to_vmem [thread:$0]  %s40, 256, %s42, [#allocation6], 128, 128, 8
    $region9: #{tpu_custom_call.1} parent=1 // pred_fallthru
      _
    // Predicated region
    $region10: #{tpu_custom_call.1} parent=1 // pred_check
      _
    $region11: #{tpu_custom_call.1} parent=1 // pred_check_branch
      %49 = sbr.rel (0) target = $region13
    $region12: #{tpu_custom_call.1} parent=1 // pred_region
      %51 = dma.done [#allocation3], 256
    $region13: #{tpu_custom_call.1} parent=1 // pred_fallthru
      _
    // Predicated region
    $region14: #{tpu_custom_call.1} parent=1 // pred_check
      _
    $region15: #{tpu_custom_call.1} parent=1 // pred_check_branch
      %53 = sbr.rel (0) target = $region17
    $region16: #{tpu_custom_call.1} parent=1 // pred_region
      %55 = dma.done [#allocation6], 256
    $region17: #{tpu_custom_call.1} parent=1 // pred_fallthru
      _
    %s56 = sadd.s32 0, 0
    %p57 = scmp.lt.s32.totalorder %s56, 0
    %s58 = scalar_select %p57, %s56, 0
    %s59 = smul.u32 2, %s58
    %s60 = sadd.s32 0, 0
    %p61 = scmp.lt.s32.totalorder %s60, 0
    %s62 = scalar_select %p61, %s60, 0
    %s63 = smul.u32 2, %s62
    %p64 = scmp.eq.s32.totalorder 0, 0
    // Predicated region
    $region18: #{tpu_custom_call.1} parent=1 // pred_check
      %p65 = pneg %p64
    $region19: #{tpu_custom_call.1} parent=1 // pred_check_branch
      %67 = sbr.rel (%p65) target = $region21
    $region20: #{tpu_custom_call.1} parent=1 // pred_region
      %68 = vst [vmem:[#allocation7] sm:$0xff] 0.0
      %69 = vst [vmem:[#allocation7 + $0x8] sm:$0xff] 0.0
      %70 = vst [vmem:[#allocation7 + $0x10] sm:$0xff] 0.0
      %71 = vst [vmem:[#allocation7 + $0x18] sm:$0xff] 0.0
    $region21: #{tpu_custom_call.1} parent=1 // pred_fallthru
      _
    %v72 = vld [vmem:[#allocation2] sm:$0xff]
    %v73 = vld [vmem:[#allocation2 + $0x8] sm:$0xff]
    %v74 = vld [vmem:[#allocation5] sm:$0xff]
    %v75 = vld [vmem:[#allocation5 + $0x8] sm:$0xff]
    %v76 = vmul.f32 %v72, 0.5
    %v77 = vmul.f32 %v73, 0.5
    %v78 = vtanh.pop %v76
    %v79 = vtanh.pop %v77
    %v80 = vadd.f32 %v78, 1.0
    %v81 = vadd.f32 %v79, 1.0
    %v82 = vmul.f32 %v80, 0.5
    %v83 = vmul.f32 %v81, 0.5
    %v84 = vmul.f32 %v82, %v74
    %v85 = vmul.f32 %v83, %v75
    %v86 = vadd.f32 %v84, 0.0
    %v87 = vadd.f32 %v85, 0.0
    %v88 = vadd.f32 %v82, %v74
    %v89 = vadd.f32 %v83, %v75
    %v90 = vadd.f32 %v88, 0.0
    %v91 = vadd.f32 %v89, 0.0
    %v92 = vld [vmem:[#allocation7] sm:$0xff]
    %v93 = vld [vmem:[#allocation7 + $0x8] sm:$0xff]
    %v94 = vadd.f32 %v92, %v86
    %v95 = vadd.f32 %v93, %v87
    %96 = vst [vmem:[#allocation7] sm:$0xff] %v94
    %97 = vst [vmem:[#allocation7 + $0x8] sm:$0xff] %v95
    %s98 = scalar_lea.vmem [#allocation7], 16
    %v99 = vld [vmem:[%s98] sm:$0xff]
    %v100 = vld [vmem:[%s98 + $0x8] sm:$0xff]
    %v101 = vadd.f32 %v99, %v90
    %v102 = vadd.f32 %v100, %v91
    %103 = vst [vmem:[%s98] sm:$0xff] %v101
    %104 = vst [vmem:[%s98 + $0x8] sm:$0xff] %v102
    // Predicated region
    $region22: #{tpu_custom_call.1} parent=1 // pred_check
      _
    $region23: #{tpu_custom_call.1} parent=1 // pred_check_branch
      %106 = sbr.rel (0) target = $region25
    $region24: #{tpu_custom_call.1} parent=1 // pred_region
      %108 = vsyncadd [#allocation4], 0
      %s109 = sshll.u32 [#allocation7], 4
      %s110 = int_to_ptr.vmem [resolvable:$true] %s109
      %s111 = sshll.u32 %s2, 4
      %s112 = int_to_ptr.hbm [resolvable:$true] %s111
      %117 = dma.vmem_to_hbm [thread:$0]  %s110, 512, %s112, [#allocation4], 128, 128, 8
    $region25: #{tpu_custom_call.1} parent=1 // pred_fallthru
      _
    // Predicated region
    $region26: #{tpu_custom_call.1} parent=1 // pred_check
      _
    $region27: #{tpu_custom_call.1} parent=1 // pred_check_branch
      %119 = sbr.rel (0) target = $region29
    $region28: #{tpu_custom_call.1} parent=1 // pred_region
      %121 = dma.done [#allocation4], 512
    $region29: #{tpu_custom_call.1} parent=1 // pred_fallthru
      _
    %122 = vsyncpa [#allocation3], 1
    %123 = vsyncpa [#allocation6], 1
    %124 = vsyncpa [#allocation4], 1

// kernel: tpu_custom_call.1
$region0: #{tpu_custom_call.1}
  #allocation0 [shape = 'u32[]', space=smem, size = 0x4, offset = 0x4, fixed_abs, tag = 'smem constant byte address 0x4 - core index']
  #allocation1 [shape = 'u32[72,128]{1,0:T(1,128)}', space=vmem, size = 0x9000, scoped, tag = 'internal scratch']
  %s0 = inlined_call_operand.hbm [shape: f32[16,128], index: 0, kind: input, shape index: {}]
  %s1 = inlined_call_operand.hbm [shape: f32[16,128], index: 1, kind: input, shape index: {}]
  %s2 = inlined_call_operand.hbm [shape: f32[1,2,16,128], index: 2, kind: output, shape index: {}]
  %s3 = sld [smem:[#allocation0]]
  $region30: #{tpu_custom_call.1} parent=0
    _
  %s5 = ssub.s32 1, %s3
  %s6 = scalar_select 0, %s5, %s3
  $region1: #{tpu_custom_call.1} parent=0
    #allocation2 [shape = 'u8[8192]{0}', space=vmem, size = 0x2000, scoped, tag = 'input window, operand 0, single buffered']
    #allocation3 [shape = 's32[1]{0}', space=sflag, size = 0x4, scoped, tag = 'scoped memory for tpu_custom_call.1']
    #allocation4 [shape = 's32[1]{0}', space=sflag, size = 0x4, scoped, tag = 'scoped memory for tpu_custom_call.1']
    #allocation5 [shape = 'u8[8192]{0}', space=vmem, size = 0x2000, scoped, tag = 'input window, operand 1, single buffered']
    #allocation6 [shape = 's32[1]{0}', space=sflag, size = 0x4, scoped, tag = 'scoped memory for tpu_custom_call.1']
    #allocation7 [shape = 'u8[16384]{0}', space=vmem, size = 0x4000, scoped, tag = 'output window, operand 0, single buffered']
    %7 = vsyncpa [#allocation3], 0
    %8 = vsyncpa [#allocation6], 0
    %9 = vsyncpa [#allocation4], 0
    // Predicated region
    $region2: #{tpu_custom_call.1} parent=1 // pred_check
      _
    $region3: #{tpu_custom_call.1} parent=1 // pred_check_branch
      %11 = sbr.rel (0) target = $region5
    $region4: #{tpu_custom_call.1} parent=1 // pred_region
      %s12 = sadd.s32 0, 0
      %p13 = scmp.lt.s32.totalorder %s12, 0
      %s14 = scalar_select %p13, %s12, 0
      %s15 = smul.u32 2, %s14
      %17 = vsyncadd [#allocation3], 0
      %s18 = smul.addr %s15, 8
      %s19 = scalar_lea.hbm %s0, %s18
      %s20 = sshll.u32 %s19, 4
      %s21 = int_to_ptr.hbm [resolvable:$true] %s20
      %s22 = sshll.u32 [#allocation2], 4
      %s23 = int_to_ptr.vmem [resolvable:$true] %s22
      %28 = dma.hbm_to_vmem [thread:$0]  %s21, 256, %s23, [#allocation3], 128, 128, 8
    $region5: #{tpu_custom_call.1} parent=1 // pred_fallthru
      _
    // Predicated region
    $region6: #{tpu_custom_call.1} parent=1 // pred_check
      _
    $region7: #{tpu_custom_call.1} parent=1 // pred_check_branch
      %30 = sbr.rel (0) target = $region9
    $region8: #{tpu_custom_call.1} parent=1 // pred_region
      %s31 = sadd.s32 0, 0
      %p32 = scmp.lt.s32.totalorder %s31, 0
      %s33 = scalar_select %p32, %s31, 0
      %s34 = smul.u32 2, %s33
      %36 = vsyncadd [#allocation6], 0
      %s37 = smul.addr %s34, 8
      %s38 = scalar_lea.hbm %s1, %s37
      %s39 = sshll.u32 %s38, 4
      %s40 = int_to_ptr.hbm [resolvable:$true] %s39
      %s41 = sshll.u32 [#allocation5], 4
      %s42 = int_to_ptr.vmem [resolvable:$true] %s41
      %47 = dma.hbm_to_vmem [thread:$0]  %s40, 256, %s42, [#allocation6], 128, 128, 8
    $region9: #{tpu_custom_call.1} parent=1 // pred_fallthru
      _
    // Predicated region
    $region10: #{tpu_custom_call.1} parent=1 // pred_check
      _
    $region11: #{tpu_custom_call.1} parent=1 // pred_check_branch
      %49 = sbr.rel (0) target = $region13
    $region12: #{tpu_custom_call.1} parent=1 // pred_region
      %51 = dma.done [#allocation3], 256
    $region13: #{tpu_custom_call.1} parent=1 // pred_fallthru
      _
    // Predicated region
    $region14: #{tpu_custom_call.1} parent=1 // pred_check
      _
    $region15: #{tpu_custom_call.1} parent=1 // pred_check_branch
      %53 = sbr.rel (0) target = $region17
    $region16: #{tpu_custom_call.1} parent=1 // pred_region
      %55 = dma.done [#allocation6], 256
    $region17: #{tpu_custom_call.1} parent=1 // pred_fallthru
      _
    %s56 = sadd.s32 0, 0
    %p57 = scmp.lt.s32.totalorder %s56, 0
    %s58 = scalar_select %p57, %s56, 0
    %s59 = smul.u32 2, %s58
    %s60 = sadd.s32 0, 0
    %p61 = scmp.lt.s32.totalorder %s60, 0
    %s62 = scalar_select %p61, %s60, 0
    %s63 = smul.u32 2, %s62
    %p64 = scmp.eq.s32.totalorder 0, 0
    // Predicated region
    $region18: #{tpu_custom_call.1} parent=1 // pred_check
      %p65 = pneg %p64
    $region19: #{tpu_custom_call.1} parent=1 // pred_check_branch
      %67 = sbr.rel (%p65) target = $region21
    $region20: #{tpu_custom_call.1} parent=1 // pred_region
      %68 = vst [vmem:[#allocation7] sm:$0xff] 0.0
      %69 = vst [vmem:[#allocation7 + $0x8] sm:$0xff] 0.0
      %70 = vst [vmem:[#allocation7 + $0x10] sm:$0xff] 0.0
      %71 = vst [vmem:[#allocation7 + $0x18] sm:$0xff] 0.0
    $region21: #{tpu_custom_call.1} parent=1 // pred_fallthru
      _
    %v72 = vld [vmem:[#allocation2] sm:$0xff]
    %v73 = vld [vmem:[#allocation2 + $0x8] sm:$0xff]
    %v74 = vld [vmem:[#allocation5] sm:$0xff]
    %v75 = vld [vmem:[#allocation5 + $0x8] sm:$0xff]
    %v76 = vmul.f32 %v72, 0.5
    %v77 = vmul.f32 %v73, 0.5
    %v78 = vtanh.pop %v76
    %v79 = vtanh.pop %v77
    %v80 = vadd.f32 %v78, 1.0
    %v81 = vadd.f32 %v79, 1.0
    %v82 = vmul.f32 %v80, 0.5
    %v83 = vmul.f32 %v81, 0.5
    %v84 = vmul.f32 %v82, %v74
    %v85 = vmul.f32 %v83, %v75
    %v86 = vadd.f32 %v84, 0.0
    %v87 = vadd.f32 %v85, 0.0
    %v88 = vadd.f32 %v82, %v74
    %v89 = vadd.f32 %v83, %v75
    %v90 = vadd.f32 %v88, 0.0
    %v91 = vadd.f32 %v89, 0.0
    %v92 = vld [vmem:[#allocation7] sm:$0xff]
    %v93 = vld [vmem:[#allocation7 + $0x8] sm:$0xff]
    %v94 = vadd.f32 %v92, %v86
    %v95 = vadd.f32 %v93, %v87
    %96 = vst [vmem:[#allocation7] sm:$0xff] %v94
    %97 = vst [vmem:[#allocation7 + $0x8] sm:$0xff] %v95
    %s98 = scalar_lea.vmem [#allocation7], 16
    %v99 = vld [vmem:[%s98] sm:$0xff]
    %v100 = vld [vmem:[%s98 + $0x8] sm:$0xff]
    %v101 = vadd.f32 %v99, %v90
    %v102 = vadd.f32 %v100, %v91
    %103 = vst [vmem:[%s98] sm:$0xff] %v101
    %104 = vst [vmem:[%s98 + $0x8] sm:$0xff] %v102
    // Predicated region
    $region22: #{tpu_custom_call.1} parent=1 // pred_check
      _
    $region23: #{tpu_custom_call.1} parent=1 // pred_check_branch
      %106 = sbr.rel (0) target = $region25
    $region24: #{tpu_custom_call.1} parent=1 // pred_region
      %108 = vsyncadd [#allocation4], 0
      %s109 = sshll.u32 [#allocation7], 4
      %s110 = int_to_ptr.vmem [resolvable:$true] %s109
      %s111 = sshll.u32 %s2, 4
      %s112 = int_to_ptr.hbm [resolvable:$true] %s111
      %117 = dma.vmem_to_hbm [thread:$0]  %s110, 512, %s112, [#allocation4], 128, 128, 8
    $region25: #{tpu_custom_call.1} parent=1 // pred_fallthru
      _
    // Predicated region
    $region26: #{tpu_custom_call.1} parent=1 // pred_check
      _
    $region27: #{tpu_custom_call.1} parent=1 // pred_check_branch
      %119 = sbr.rel (0) target = $region29
    $region28: #{tpu_custom_call.1} parent=1 // pred_region
      %121 = dma.done [#allocation4], 512
    $region29: #{tpu_custom_call.1} parent=1 // pred_fallthru
      _
    %122 = vsyncpa [#allocation3], 1
    %123 = vsyncpa [#allocation6], 1
    %124 = vsyncpa [#allocation4], 1

</llo_original>
